<compile_context>
chip_gen: v5e
topology: v5e:2x2
jax: 0.10.0
libtpu: 0.0.40
codegen_flags: <defaults>
</compile_context>

<pallas_src>
import functools

import jax
import jax.numpy as jnp
from jax.experimental import pallas as pl
from jax.experimental.pallas import tpu as pltpu

_LANE = 128


# ----------------------------- helpers --------------------------------------
def _round_up(x, m):
    return ((x + m - 1) // m) * m


def _get_activation(name):
    name = (name or "relu").lower()
    acts = {
        "relu": lambda x: jnp.maximum(x, 0.0),
        "leakyrelu": lambda x: jax.nn.leaky_relu(x, negative_slope=0.01),
        "tanh": jnp.tanh,
        "sigmoid": jax.nn.sigmoid,
        "gelu": lambda x: jax.nn.gelu(x, approximate=False),
        "elu": jax.nn.elu,
        "smht": lambda x: jnp.clip(x, -1.0, 1.0),  # Hardtanh
        "id": lambda x: x,  # TODO(synk): torch encoder 'id' uses nn.LayerNorm(1)
    }
    if name not in acts:
        raise ValueError(f"Unsupported activation: {name}")
    return acts[name]


def _vmem_limit_bytes():
    """Generation-aware scoped-VMEM limit: ~3/4 of physical, capped at 96 MiB
    (v5e/v6e: 128 MiB -> 96 MiB; v7x: 64 MiB per TC -> 48 MiB)."""
    cap = 128 * 1024 * 1024
    try:
        cap = int(pltpu.get_tpu_info().vmem_capacity_bytes)
    except Exception:
        pass
    return max(32 * 1024 * 1024, min((cap * 3) // 4, 96 * 1024 * 1024))


# ----------------------------- kernels ---------------------------------------
def _encoder_kernel(x_ref, we_ref, enc_ref, ssq_ref, xsq_ref):
    """Per-core reduction over wide D tiles:
         enc_partial[c] += x_tile @ We_tile   (MXU, f32 accumulate, resident)
         xsq            += x_tile * x_tile    (VPU element-wise, VMEM scratch)
       One reduction of xsq -> per-core ||x||^2 partial at the last step."""
    k = pl.program_id(1)

    @pl.when(k == 0)
    def _init():
        enc_ref[...] = jnp.zeros_like(enc_ref)
        xsq_ref[...] = jnp.zeros_like(xsq_ref)

    x = x_ref[...]                                             # (B, dt) f32
    # bf16 x bf16 -> f32 on the MXU; weights stay bf16 all the way from HBM.
    enc_ref[0] += jnp.dot(x.astype(jnp.bfloat16), we_ref[...],
                          preferred_element_type=jnp.float32)
    # ||x||^2 partial: x is already streamed for the matmul -> free reuse;
    # pure VPU per step, reduced once below (no per-step cross-lane reduce).
    xsq_ref[...] += x * x

    @pl.when(k == pl.num_programs(1) - 1)
    def _finalize():
        ssq_ref[...] = jnp.full(ssq_ref.shape, jnp.sum(xsq_ref[...]),
                                jnp.float32)


def _decoder_kernel(enc_ref, wd_ref, dec_ref, *, act):
    """Expansion over D tiles, no decoder bias (bias_decoder=False)."""
    y = jnp.dot(enc_ref[...], wd_ref[...], preferred_element_type=jnp.float32)
    dec_ref[...] = act(y).astype(dec_ref.dtype)


def _decoder_kernel_bias(enc_ref, wd_ref, bd_ref, dec_ref, *, act):
    y = jnp.dot(enc_ref[...], wd_ref[...], preferred_element_type=jnp.float32)
    dec_ref[...] = act(y + bd_ref[...]).astype(dec_ref.dtype)


# ----------------------------- wrapper ----------------------------------------
def prepare_params(w_enc, b_enc, w_dec, b_dec=None, *, d_tile=8192,
                   weight_dtype=jnp.bfloat16):
    """One-time weight repacking (outside the forward hot path): transpose,
    zero-pad latent dim to 128 lanes and input_dim to a multiple of the D tile,
    cast to bf16.  d_tile should be a multiple of 128; 8192-16384 keeps every
    grid step DMA-dominated (2-4 MiB weight slices).
    TODO(synk): optional int8 (v5e/v6e) / fp8 (v7x) weight packing."""
    w_enc = jnp.asarray(w_enc)
    w_dec = jnp.asarray(w_dec)
    b_enc = jnp.asarray(b_enc)
    L, D = w_enc.shape
    assert w_dec.shape == (D, L)

    Lp = _round_up(L, _LANE)
    dt = max(_LANE, (int(d_tile) // _LANE) * _LANE)
    dt = min(dt, _round_up(D, _LANE))
    Dp = _round_up(D, dt)
    n_tiles = Dp // dt
    # Split the encoder reduction across 2 TensorCores (v7x) when the tile
    # count is even; harmless (serial) on single-TC chips (v5e/v6e).
    n_split = 2 if (n_tiles % 2 == 0 and n_tiles >= 2) else 1
    n_inner = n_tiles // n_split

    we_t = jnp.zeros((Dp, Lp), weight_dtype).at[:D, :L].set(
        w_enc.T.astype(weight_dtype))
    be = jnp.zeros((1, Lp), jnp.float32).at[0, :L].set(b_enc.astype(jnp.float32))
    wd_t = jnp.zeros((Lp, Dp), weight_dtype).at[:L, :D].set(
        w_dec.T.astype(weight_dtype))
    bd = None
    if b_dec is not None:
        bd = jnp.zeros((1, Dp), jnp.float32).at[0, :D].set(
            jnp.asarray(b_dec).astype(jnp.float32))

    return {"we_t": we_t, "be": be, "wd_t": wd_t, "bd": bd,
            "input_dim": D, "padded_dim": Dp, "latent_dim": L,
            "latent_pad": Lp, "d_tile": dt, "n_tiles": n_tiles,
            "n_split": n_split, "n_inner": n_inner}


def gradiend_forward(x, params, *, activation="relu", activation_decoder=None):
    """Pallas forward. Returns (decoded, grad_norm).

    The running average (avg_gradient_norm / ctr) of the torch module is
    host-side Python state — keep it in the caller using the returned norm."""
    squeeze = (x.ndim == 1)
    if squeeze:
        x = x[None, :]
    x = x.astype(jnp.float32)
    B, D = x.shape
    assert D == params["input_dim"], (D, params["input_dim"])

    we_t, be, wd_t, bd = params["we_t"], params["be"], params["wd_t"], params["bd"]
    Dp, Lp = params["padded_dim"], params["latent_pad"]
    dt = params["d_tile"]
    n_split, n_inner, n_tiles = (params["n_split"], params["n_inner"],
                                 params["n_tiles"])
    if Dp != D:
        x = jnp.pad(x, ((0, 0), (0, Dp - D)))   # zeros: no effect on matmul/norm

    act_enc = _get_activation(activation)
    act_dec = _get_activation(activation_decoder or activation)
    vmem_limit = _vmem_limit_bytes()

    # ---- phase 1: encoder reduction (per-core partials) + grad-norm ----------
    enc_partial, ssq_partial = pl.pallas_call(
        _encoder_kernel,
        grid=(n_split, n_inner),
        in_specs=[
            pl.BlockSpec((B, dt), lambda c, k: (0, c * n_inner + k)),   # x tile
            pl.BlockSpec((dt, Lp), lambda c, k: (c * n_inner + k, 0)),  # W_enc^T
        ],
        out_specs=(
            pl.BlockSpec((1, B, Lp), lambda c, k: (c, 0, 0)),     # partial acc
            pl.BlockSpec((1, 1, _LANE), lambda c, k: (c, 0, 0)),  # partial ||x||^2
        ),
        out_shape=(
            jax.ShapeDtypeStruct((n_split, B, Lp), jnp.float32),
            jax.ShapeDtypeStruct((n_split, 1, _LANE), jnp.float32),
        ),
        scratch_shapes=[pltpu.VMEM((B, dt), jnp.float32)],        # x^2 accumulator
        compiler_params=pltpu.CompilerParams(
            dimension_semantics=("parallel", "arbitrary"),
            vmem_limit_bytes=vmem_limit,
        ),
    )(x, we_t)

    # Combine partials + bias + activation once (tiny (n_split, B, 128) op).
    # Emit bf16 so the decoder reads a resident bf16 block with no per-step cast.
    enc = act_enc(jnp.sum(enc_partial, axis=0) + be).astype(jnp.bfloat16)
    grad_norm = jnp.sqrt(jnp.sum(ssq_partial[:, 0, 0]))

    # ---- phase 2: decoder expansion over D tiles ------------------------------
    if bd is None:
        kern = functools.partial(_decoder_kernel, act=act_dec)
        in_specs = [
            pl.BlockSpec((B, Lp), lambda d: (0, 0)),              # enc (resident)
            pl.BlockSpec((Lp, dt), lambda d: (0, d)),             # W_dec^T tile
        ]
        operands = (enc, wd_t)
    else:
        kern = functools.partial(_decoder_kernel_bias, act=act_dec)
        in_specs = [
            pl.BlockSpec((B, Lp), lambda d: (0, 0)),
            pl.BlockSpec((Lp, dt), lambda d: (0, d)),
            pl.BlockSpec((1, dt), lambda d: (0, d)),              # decoder bias tile
        ]
        operands = (enc, wd_t, bd)

    decoded = pl.pallas_call(
        kern,
        grid=(n_tiles,),
        in_specs=in_specs,
        out_specs=pl.BlockSpec((B, dt), lambda d: (0, d)),
        out_shape=jax.ShapeDtypeStruct((B, Dp), jnp.float32),
        compiler_params=pltpu.CompilerParams(
            # "parallel": independent D tiles; megacore-splittable across the
            # two TensorCores on v7x (n_tiles is kept even when possible).
            dimension_semantics=("parallel",),
            vmem_limit_bytes=vmem_limit,
        ),
    )(*operands)

    if Dp != D:
        decoded = decoded[:, :D]
    if squeeze:
        decoded = decoded[0]
    return decoded, grad_norm


# ----------------------------- reference / demo -------------------------------
def init_params(key, input_dim, latent_dim, decoder_factor=1.0, bias_decoder=False):
    """Synthetic f32 init mimicking the torch module's __init__."""
    k1, k2, k3, k4 = jax.random.split(key, 4)
    bound = 1.0 / jnp.sqrt(float(input_dim))
    w_enc = jax.random.uniform(k1, (latent_dim, input_dim), jnp.float32, -bound, bound)
    b_enc = jax.random.uniform(k2, (latent_dim,), jnp.float32, -bound, bound)
    xmax = jnp.max(w_enc) * decoder_factor
    w_dec = jax.random.uniform(k3, (input_dim, latent_dim), jnp.float32, -xmax, xmax)
    b_dec = (jax.random.uniform(k4, (input_dim,), jnp.float32, -xmax, xmax)
             if bias_decoder else None)
    return w_enc, b_enc, w_dec, b_dec


def reference_forward(x, w_enc, b_enc, w_dec, b_dec, weight_dtype=jnp.bfloat16):
    # Model semantics with weights stored in bf16 (the kernel's packed dtype),
    # math in f32.
    we = w_enc.astype(weight_dtype).astype(jnp.float32)
    wd = w_dec.astype(weight_dtype).astype(jnp.float32)
    xf = x.astype(jnp.float32)
    enc = jnp.maximum(xf @ we.T + b_enc, 0.0)
    dec = enc @ wd.T
    if b_dec is not None:
        dec = dec + b_dec
    dec = jnp.maximum(dec, 0.0)
    return dec, jnp.sqrt(jnp.sum(xf * xf))


def _run_case(key, B, input_dim, latent_dim, bias_decoder, d_tile):
    kx, kp = jax.random.split(key)
    x = jax.random.normal(kx, (B, input_dim), jnp.float32)
    w_enc, b_enc, w_dec, b_dec = init_params(kp, input_dim, latent_dim,
                                             decoder_factor=1.0,
                                             bias_decoder=bias_decoder)
    params = prepare_params(w_enc, b_enc, w_dec, b_dec, d_tile=d_tile)
    decoded, grad_norm = gradiend_forward(x, params)
    decoded = jax.block_until_ready(decoded)
    grad_norm = jax.block_until_ready(grad_norm)

    ref_dec, ref_norm = reference_forward(x, w_enc, b_enc, w_dec, b_dec)
    assert decoded.shape == (B, input_dim)
    assert jnp.allclose(decoded, ref_dec, atol=1e-2, rtol=2e-2), "decoded mismatch"
    assert jnp.allclose(grad_norm, ref_norm, atol=1e-3, rtol=1e-4), "norm mismatch"


if __name__ == "__main__":
    key = jax.random.PRNGKey(0)
    k1, k2 = jax.random.split(key)
    # Small shapes consistent with the module (flattened-gradient vectors,
    # latent_dim=32).  d_tile=256 -> 4 streamed tiles -> 2-way encoder split.
    _run_case(k1, B=2, input_dim=1024, latent_dim=32, bias_decoder=False,
              d_tile=256)
    # Ragged input_dim (zero-padded to the tile) + decoder-bias kernel path.
    _run_case(k2, B=2, input_dim=1000, latent_dim=32, bias_decoder=True,
              d_tile=256)
    print("KERNEL_OK")
</pallas_src>

<mosaic_0001>
module attributes {stable_mosaic.version = 11 : i64} {
  func.func @_encoder_kernel(%arg0: i32, %arg1: i32, %arg2: memref<2x256xf32, #tpu.memory_space<vmem>>, %arg3: memref<256x128xbf16, #tpu.memory_space<vmem>>, %arg4: memref<1x2x128xf32, #tpu.memory_space<vmem>>, %arg5: memref<1x1x128xf32, #tpu.memory_space<vmem>>, %arg6: memref<2x256xf32, #tpu.memory_space<vmem>>) attributes {dimension_semantics = [#tpu.dimension_semantics<parallel>, #tpu.dimension_semantics<arbitrary>], iteration_bounds = array<i64: 2, 2>, scalar_prefetch = 0 : i64, scratch_operands = 1 : i64, tpu.core_type = #tpu.core_type<tc>, window_params = [{transform_indices = @transform_0, window_bounds = array<i64: 2, 256>}, {transform_indices = @transform_1, window_bounds = array<i64: 256, 128>}, {transform_indices = @transform_2, window_bounds = array<i64: 1, 2, 128>}, {transform_indices = @transform_3, window_bounds = array<i64: 1, 1, 128>}]} {
    %c0_i32 = arith.constant 0 : i32
    %0 = arith.cmpi eq, %arg1, %c0_i32 : i32
    %1 = arith.extui %0 : i1 to i32
    %c0_i32_0 = arith.constant 0 : i32
    %2 = arith.cmpi ne, %1, %c0_i32_0 : i32
    scf.if %2 {
      %cst_15 = arith.constant 0.000000e+00 : f32
      %20 = vector.broadcast %cst_15 : f32 to vector<1x2x128xf32>
      %c0_16 = arith.constant 0 : index
      %c0_17 = arith.constant 0 : index
      %c0_18 = arith.constant 0 : index
      %21 = vector.load %arg4[%c0_16, %c0_17, %c0_18] : memref<1x2x128xf32, #tpu.memory_space<vmem>>, vector<1x2x128xf32>
      tpu.vector_store %arg4[%c0_16, %c0_17, %c0_18], %20 {strides = array<i32>} : memref<1x2x128xf32, #tpu.memory_space<vmem>>, vector<1x2x128xf32>,
      %cst_19 = arith.constant 0.000000e+00 : f32
      %22 = vector.broadcast %cst_19 : f32 to vector<2x256xf32>
      %c0_20 = arith.constant 0 : index
      %c0_21 = arith.constant 0 : index
      %23 = vector.load %arg6[%c0_20, %c0_21] : memref<2x256xf32, #tpu.memory_space<vmem>>, vector<2x256xf32>
      tpu.vector_store %arg6[%c0_20, %c0_21], %22 {strides = array<i32>} : memref<2x256xf32, #tpu.memory_space<vmem>>, vector<2x256xf32>,
    } else {
    }
    %c0 = arith.constant 0 : index
    %c0_1 = arith.constant 0 : index
    %3 = vector.load %arg2[%c0, %c0_1] : memref<2x256xf32, #tpu.memory_space<vmem>>, vector<2x256xf32>
    %c0_2 = arith.constant 0 : index
    %c0_3 = arith.constant 0 : index
    %c0_4 = arith.constant 0 : index
    %4 = vector.load %arg4[%c0_2, %c0_3, %c0_4] : memref<1x2x128xf32, #tpu.memory_space<vmem>>, vector<1x2x128xf32>
    %5 = vector.shape_cast %4 : vector<1x2x128xf32> to vector<2x128xf32>
    %6 = arith.truncf %3 : vector<2x256xf32> to vector<2x256xbf16>
    %c0_5 = arith.constant 0 : index
    %c0_6 = arith.constant 0 : index
    %7 = vector.load %arg3[%c0_5, %c0_6] : memref<256x128xbf16, #tpu.memory_space<vmem>>, vector<256x128xbf16>
    %cst = arith.constant dense<0.000000e+00> : vector<2x128xf32>
    %8 = tpu.matmul %6, %7, %cst {dimension_numbers = #tpu.dot_dimension_numbers<[1], [0], [0], [1], [0, 0, 1, 1], [], []>} : vector<2x256xbf16>, vector<256x128xbf16>, vector<2x128xf32> -> vector<2x128xf32>
    %9 = arith.addf %5, %8 : vector<2x128xf32>
    %c0_7 = arith.constant 0 : index
    %c0_8 = arith.constant 0 : index
    %c0_9 = arith.constant 0 : index
    %10 = vector.load %arg4[%c0_7, %c0_8, %c0_9] : memref<1x2x128xf32, #tpu.memory_space<vmem>>, vector<1x2x128xf32>
    %11 = vector.shape_cast %10 : vector<1x2x128xf32> to vector<2x128xf32>
    %12 = vector.shape_cast %9 : vector<2x128xf32> to vector<1x2x128xf32>
    tpu.vector_store %arg4[%c0_7, %c0_8, %c0_9], %12 {strides = array<i32>} : memref<1x2x128xf32, #tpu.memory_space<vmem>>, vector<1x2x128xf32>,
    %c0_10 = arith.constant 0 : index
    %c0_11 = arith.constant 0 : index
    %13 = vector.load %arg6[%c0_10, %c0_11] : memref<2x256xf32, #tpu.memory_space<vmem>>, vector<2x256xf32>
    %14 = arith.mulf %3, %3 : vector<2x256xf32>
    %15 = arith.addf %13, %14 : vector<2x256xf32>
    %c0_12 = arith.constant 0 : index
    %c0_13 = arith.constant 0 : index
    %16 = vector.load %arg6[%c0_12, %c0_13] : memref<2x256xf32, #tpu.memory_space<vmem>>, vector<2x256xf32>
    tpu.vector_store %arg6[%c0_12, %c0_13], %15 {strides = array<i32>} : memref<2x256xf32, #tpu.memory_space<vmem>>, vector<2x256xf32>,
    %c1_i32 = arith.constant 1 : i32
    %17 = arith.cmpi eq, %arg1, %c1_i32 : i32
    %18 = arith.extui %17 : i1 to i32
    %c0_i32_14 = arith.constant 0 : i32
    %19 = arith.cmpi ne, %18, %c0_i32_14 : i32
    scf.if %19 {
      %c0_15 = arith.constant 0 : index
      %c0_16 = arith.constant 0 : index
      %20 = vector.load %arg6[%c0_15, %c0_16] : memref<2x256xf32, #tpu.memory_space<vmem>>, vector<2x256xf32>
      %21 = vector.shape_cast %20 : vector<2x256xf32> to vector<1x2x256xf32>
      %cst_17 = arith.constant dense<0.000000e+00> : vector<1xf32>
      %22 = vector.multi_reduction <add>, %21, %cst_17 [1, 2] : vector<1x2x256xf32> to vector<1xf32>
      %23 = vector.shape_cast %22 : vector<1xf32> to vector<1x1x1xf32>
      %24 = vector.extract %23[0, 0, 0] : f32 from vector<1x1x1xf32>
      %25 = vector.broadcast %24 : f32 to vector<1x1x128xf32>
      %c0_18 = arith.constant 0 : index
      %c0_19 = arith.constant 0 : index
      %c0_20 = arith.constant 0 : index
      %26 = vector.load %arg5[%c0_18, %c0_19, %c0_20] : memref<1x1x128xf32, #tpu.memory_space<vmem>>, vector<1x1x128xf32>
      tpu.vector_store %arg5[%c0_18, %c0_19, %c0_20], %25 {strides = array<i32>} : memref<1x1x128xf32, #tpu.memory_space<vmem>>, vector<1x1x128xf32>,
    } else {
    }
    return
  }
  func.func @transform_0(%arg0: i32, %arg1: i32) -> (i32, i32) {
    %c2_i32 = arith.constant 2 : i32
    %0 = arith.muli %arg0, %c2_i32 : i32
    %1 = arith.addi %0, %arg1 : i32
    %c0_i32 = arith.constant 0 : i32
    %c0_i32_0 = arith.constant 0 : i32
    return %c0_i32, %1 : i32, i32
  }
  func.func @transform_1(%arg0: i32, %arg1: i32) -> (i32, i32) {
    %c2_i32 = arith.constant 2 : i32
    %0 = arith.muli %arg0, %c2_i32 : i32
    %1 = arith.addi %0, %arg1 : i32
    %c0_i32 = arith.constant 0 : i32
    %c0_i32_0 = arith.constant 0 : i32
    return %1, %c0_i32 : i32, i32
  }
  func.func @transform_2(%arg0: i32, %arg1: i32) -> (i32, i32, i32) {
    %c0_i32 = arith.constant 0 : i32
    %c0_i32_0 = arith.constant 0 : i32
    %c0_i32_1 = arith.constant 0 : i32
    return %arg0, %c0_i32, %c0_i32_0 : i32, i32, i32
  }
  func.func @transform_3(%arg0: i32, %arg1: i32) -> (i32, i32, i32) {
    %c0_i32 = arith.constant 0 : i32
    %c0_i32_0 = arith.constant 0 : i32
    %c0_i32_1 = arith.constant 0 : i32
    return %arg0, %c0_i32, %c0_i32_0 : i32, i32, i32
  }
}

</mosaic_0001>

<llo_original>
// kernel: tpu_custom_call.1
$region0: #{tpu_custom_call.1}
  #allocation0 [shape = 'u32[]', space=smem, size = 0x4, offset = 0x4, fixed_abs, tag = 'smem constant byte address 0x4 - core index']
  #allocation1 [shape = 'u32[72,128]{1,0:T(1,128)}', space=vmem, size = 0x9000, scoped, tag = 'internal scratch']
  #allocation2 [shape = 'f32[2,256]{1,0:T(2,128)}', space=vmem, size = 0x800, scoped, tag = 'scratch operand']
  %s0 = inlined_call_operand.hbm [shape: f32[2,1024], index: 0, kind: input, shape index: {}]
  %s1 = inlined_call_operand.hbm [shape: bf16[1024,128], index: 1, kind: input, shape index: {}]
  %s2 = inlined_call_operand.hbm [shape: f32[2,2,128], index: 2, kind: output, shape index: {0}]
  %s3 = inlined_call_operand.hbm [shape: f32[2,1,128], index: 3, kind: output, shape index: {1}]
  %4 = xla_tuple %s2, %s3
  %s5 = sld [smem:[#allocation0]]
  $region65: #{tpu_custom_call.1} parent=0
    _
  %s7 = ssub.s32 1, %s5
  %s8 = scalar_select 0, %s7, %s5
  $region1: #{tpu_custom_call.1} parent=0
    #allocation3 [shape = 'u8[4096]{0}', space=vmem, size = 0x1000, scoped, tag = 'input window, operand 0']
    #allocation4 [shape = 's32[2]{0}', space=sflag, size = 0x8, scoped, tag = 'scoped memory for tpu_custom_call.1']
    #allocation5 [shape = 's32[2]{0}', space=sflag, size = 0x8, scoped, tag = 'scoped memory for tpu_custom_call.1']
    #allocation6 [shape = 'u8[131072]{0}', space=vmem, size = 0x20000, scoped, tag = 'input window, operand 1']
    #allocation7 [shape = 's32[2]{0}', space=sflag, size = 0x8, scoped, tag = 'scoped memory for tpu_custom_call.1']
    #allocation8 [shape = 'u8[2048]{0}', space=vmem, size = 0x800, scoped, tag = 'output window, operand 0']
    #allocation9 [shape = 'u8[1024]{0}', space=vmem, size = 0x400, scoped, tag = 'output window, operand 1']
    #allocation10 [shape = 's32[2]{0}', space=sflag, size = 0x8, scoped, tag = 'scoped memory for tpu_custom_call.1']
    %9 = vsyncpa [#allocation4], 0
    %s10 = scalar_lea.sflag [#allocation4], 1
    %11 = vsyncpa %s10, 0
    %12 = vsyncpa [#allocation7], 0
    %s13 = scalar_lea.sflag [#allocation7], 1
    %14 = vsyncpa %s13, 0
    %15 = vsyncpa [#allocation5], 0
    %s16 = scalar_lea.sflag [#allocation5], 1
    %17 = vsyncpa %s16, 0
    %18 = vsyncpa [#allocation10], 0
    %s19 = scalar_lea.sflag [#allocation10], 1
    %20 = vsyncpa %s19, 0
    loop: start=0, step=1, limit=6
    $region2: #{tpu_custom_call.1} parent=1 // loop_pre_header
      _
    $region3: #{tpu_custom_call.1} parent=1 // loop_header
      %s22 = sphi 0, %s26
      %p23 = scmp.ge.s32.totalorder %s22, 6
      %s29 = sphi 0, %s41
      %s30 = sphi 0, %s37
      %s31 = sphi 0, %s29
      %s32 = sphi 0, %s30
      %s33 = sphi 0, %s31
      %s34 = sphi 0, %s32
      %s48 = sphi 0, %s50
      %s51 = sphi 0, %s48
      %s52 = sphi 0, %s51
      %s68 = sphi 0, %s52
      %s78 = sphi 0, %s80
      %s81 = sphi 0, %s78
      %s82 = sphi 0, %s81
      %s98 = sphi 0, %s82
      %s104 = sphi 0, %s106
      %s107 = sphi 0, %s104
      %s108 = sphi 0, %s107
      %s124 = sphi 0, %s108
      %s130 = sphi 0, %s132
      %s133 = sphi 0, %s130
      %s134 = sphi 0, %s133
      %s150 = sphi 0, %s134
    $region4: #{tpu_custom_call.1} parent=1 // loop_header_branch
      %25 = sbr.rel (%p23) target = $region8
    $region5: #{tpu_custom_call.1} parent=1 // loop_body
      %s27 = ssub.s32 %s22, 1
      %s28 = ssub.s32 %s22, 2
      %s35 = sadd.s32 1, %s30
      %p36 = scmp.ge.s32.totalorder %s35, 2
      %s37 = scalar_select %p36, 0, %s35
      %s38 = sadd.s32 1, %s29
      %s39 = scalar_select %p36, %s38, %s29
      %p40 = scmp.ge.s32.totalorder %s39, 2
      %s41 = scalar_select %p40, 0, %s39
      %s42 = smul.u32 %s29, 2
      %s43 = sadd.s32 %s42, %s30
      %s44 = smul.u32 %s41, 2
      %s45 = sadd.s32 %s44, %s37
      %s46 = ssub.s32 %s43, %s45
      %p47 = scmp.eq.s32.totalorder %s46, 0
      %s49 = sadd.s32 %s48, 1
      %s50 = scalar_select %p47, %s48, %s49
      %p53 = pneg %p47
      %p54 = scmp.eq.s32.totalorder %s22, 3
      %p55 = por %p53, %p54
      %p56 = scmp.ne.s32.totalorder %s48, %s51
      %p57 = scmp.eq.s32.totalorder %s22, 0
      %p58 = por %p56, %p57
      %p59 = scmp.ne.s32.totalorder %s48, %s51
      %p60 = scmp.eq.s32.totalorder %s27, 3
      %p61 = por %p59, %p60
      %p62 = scmp.ne.s32.totalorder %s51, %s52
      %p63 = scmp.eq.s32.totalorder %s27, 0
      %p64 = por %p62, %p63
      %p65 = scmp.ne.s32.totalorder %s51, %s52
      %p66 = scmp.eq.s32.totalorder %s28, 3
      %p67 = por %p65, %p66
      %p69 = scmp.ne.s32.totalorder %s52, %s68
      %p70 = scmp.eq.s32.totalorder %s28, 0
      %p71 = por %p69, %p70
      %s72 = smul.u32 %s29, 2
      %s73 = sadd.s32 %s72, %s30
      %s74 = smul.u32 %s41, 2
      %s75 = sadd.s32 %s74, %s37
      %s76 = ssub.s32 %s73, %s75
      %p77 = scmp.eq.s32.totalorder %s76, 0
      %s79 = sadd.s32 %s78, 1
      %s80 = scalar_select %p77, %s78, %s79
      %p83 = pneg %p77
      %p84 = scmp.eq.s32.totalorder %s22, 3
      %p85 = por %p83, %p84
      %p86 = scmp.ne.s32.totalorder %s78, %s81
      %p87 = scmp.eq.s32.totalorder %s22, 0
      %p88 = por %p86, %p87
      %p89 = scmp.ne.s32.totalorder %s78, %s81
      %p90 = scmp.eq.s32.totalorder %s27, 3
      %p91 = por %p89, %p90
      %p92 = scmp.ne.s32.totalorder %s81, %s82
      %p93 = scmp.eq.s32.totalorder %s27, 0
      %p94 = por %p92, %p93
      %p95 = scmp.ne.s32.totalorder %s81, %s82
      %p96 = scmp.eq.s32.totalorder %s28, 3
      %p97 = por %p95, %p96
      %p99 = scmp.ne.s32.totalorder %s82, %s98
      %p100 = scmp.eq.s32.totalorder %s28, 0
      %p101 = por %p99, %p100
      %s102 = ssub.s32 %s29, %s41
      %p103 = scmp.eq.s32.totalorder %s102, 0
      %s105 = sadd.s32 %s104, 1
      %s106 = scalar_select %p103, %s104, %s105
      %p109 = pneg %p103
      %p110 = scmp.eq.s32.totalorder %s22, 3
      %p111 = por %p109, %p110
      %p112 = scmp.ne.s32.totalorder %s104, %s107
      %p113 = scmp.eq.s32.totalorder %s22, 0
      %p114 = por %p112, %p113
      %p115 = scmp.ne.s32.totalorder %s104, %s107
      %p116 = scmp.eq.s32.totalorder %s27, 3
      %p117 = por %p115, %p116
      %p118 = scmp.ne.s32.totalorder %s107, %s108
      %p119 = scmp.eq.s32.totalorder %s27, 0
      %p120 = por %p118, %p119
      %p121 = scmp.ne.s32.totalorder %s107, %s108
      %p122 = scmp.eq.s32.totalorder %s28, 3
      %p123 = por %p121, %p122
      %p125 = scmp.ne.s32.totalorder %s108, %s124
      %p126 = scmp.eq.s32.totalorder %s28, 0
      %p127 = por %p125, %p126
      %s128 = ssub.s32 %s29, %s41
      %p129 = scmp.eq.s32.totalorder %s128, 0
      %s131 = sadd.s32 %s130, 1
      %s132 = scalar_select %p129, %s130, %s131
      %p135 = pneg %p129
      %p136 = scmp.eq.s32.totalorder %s22, 3
      %p137 = por %p135, %p136
      %p138 = scmp.ne.s32.totalorder %s130, %s133
      %p139 = scmp.eq.s32.totalorder %s22, 0
      %p140 = por %p138, %p139
      %p141 = scmp.ne.s32.totalorder %s130, %s133
      %p142 = scmp.eq.s32.totalorder %s27, 3
      %p143 = por %p141, %p142
      %p144 = scmp.ne.s32.totalorder %s133, %s134
      %p145 = scmp.eq.s32.totalorder %s27, 0
      %p146 = por %p144, %p145
      %p147 = scmp.ne.s32.totalorder %s133, %s134
      %p148 = scmp.eq.s32.totalorder %s28, 3
      %p149 = por %p147, %p148
      %p151 = scmp.ne.s32.totalorder %s134, %s150
      %p152 = scmp.eq.s32.totalorder %s28, 0
      %p153 = por %p151, %p152
      %p154 = scmp.le.s32.totalorder 1, %s22
      %p155 = scmp.lt.s32.totalorder %s22, 5
      %p156 = pnand %p154, %p155
      %p157 = pneg %p156
      // Predicated region
      $region9: #{tpu_custom_call.1} parent=5 // pred_check
        _
      $region10: #{tpu_custom_call.1} parent=5 // pred_check_branch
        %159 = sbr.rel (%p156) target = $region12
      $region11: #{tpu_custom_call.1} parent=5 // pred_region
        %s160 = ssub.s32 %s22, 1
      $region12: #{tpu_custom_call.1} parent=5 // pred_fallthru
        _
      %p161 = scmp.lt.s32.totalorder %s22, 4
      // Predicated region
      $region13: #{tpu_custom_call.1} parent=5 // pred_check
        %p162 = pneg %p161
      $region14: #{tpu_custom_call.1} parent=5 // pred_check_branch
        %164 = sbr.rel (%p162) target = $region16
      $region15: #{tpu_custom_call.1} parent=5 // pred_region
        // Predicated region
        $region17: #{tpu_custom_call.1} parent=15 // pred_check
          %p165 = pneg %p58
        $region18: #{tpu_custom_call.1} parent=15 // pred_check_branch
          %167 = sbr.rel (%p165) target = $region20
        $region19: #{tpu_custom_call.1} parent=15 // pred_region
          %s168 = sand.u32 %s48, 1
          %s169 = scalar_lea.sflag [#allocation4], %s168
          %s170 = sand.u32 %s48, 1
          %s171 = smul.addr %s170, 4
          %s172 = scalar_lea.vmem [#allocation3], %s171
          %s173 = smul.u32 %s29, 2
          %s174 = sadd.s32 %s173, %s30
          %s175 = smul.u32 2, %s174
          %177 = vsyncadd %s169, 0
          %s178 = smul.addr %s175, 2
          %s179 = scalar_lea.hbm %s0, %s178
          %s181 = sshll.u32 %s179, 4
          %s182 = int_to_ptr.hbm [resolvable:$true] %s181
          %s183 = sshll.u32 %s172, 4
          %s184 = int_to_ptr.vmem [resolvable:$true] %s183
          %186 = dma.hbm_to_vmem [thread:$0]  %s182, 64, %s184, %s169
        $region20: #{tpu_custom_call.1} parent=15 // pred_fallthru
          _
        // Predicated region
        $region21: #{tpu_custom_call.1} parent=15 // pred_check
          %p187 = pneg %p88
        $region22: #{tpu_custom_call.1} parent=15 // pred_check_branch
          %189 = sbr.rel (%p187) target = $region24
        $region23: #{tpu_custom_call.1} parent=15 // pred_region
          %s190 = sand.u32 %s78, 1
          %s191 = scalar_lea.sflag [#allocation7], %s190
          %s192 = sand.u32 %s78, 1
          %s193 = smul.addr %s192, 128
          %s194 = scalar_lea.vmem [#allocation6], %s193
          %s195 = smul.u32 %s29, 2
          %s196 = sadd.s32 %s195, %s30
          %s197 = smul.u32 32, %s196
          %199 = vsyncadd %s191, 0
          %s200 = smul.addr %s197, 4
          %s201 = scalar_lea.hbm %s1, %s200
          %s202 = sshll.u32 %s201, 4
          %s203 = int_to_ptr.hbm [resolvable:$true] %s202
          %s204 = sshll.u32 %s194, 4
          %s205 = int_to_ptr.vmem [resolvable:$true] %s204
          %210 = dma.hbm_to_vmem [thread:$0]  %s203, 2048, %s205, %s191, 64, 64, 4
        $region24: #{tpu_custom_call.1} parent=15 // pred_fallthru
          _
      $region16: #{tpu_custom_call.1} parent=5 // pred_fallthru
        _
      %p211 = scmp.le.s32.totalorder 1, %s22
      %p212 = scmp.lt.s32.totalorder %s22, 5
      %p213 = pnand %p211, %p212
      %p214 = pneg %p213
      // Predicated region
      $region25: #{tpu_custom_call.1} parent=5 // pred_check
        _
      $region26: #{tpu_custom_call.1} parent=5 // pred_check_branch
        %216 = sbr.rel (%p213) target = $region28
      $region27: #{tpu_custom_call.1} parent=5 // pred_region
        %s217 = ssub.s32 %s22, 1
        %s218 = sand.u32 %s51, 1
        %s219 = scalar_lea.sflag [#allocation4], %s218
        %s220 = sand.u32 %s51, 1
        %s221 = smul.addr %s220, 4
        %s222 = scalar_lea.vmem [#allocation3], %s221
        // Predicated region
        $region29: #{tpu_custom_call.1} parent=27 // pred_check
          %p223 = pneg %p64
        $region30: #{tpu_custom_call.1} parent=27 // pred_check_branch
          %225 = sbr.rel (%p223) target = $region32
        $region31: #{tpu_custom_call.1} parent=27 // pred_region
          %227 = dma.done %s219, 64
        $region32: #{tpu_custom_call.1} parent=27 // pred_fallthru
          _
        %s228 = sand.u32 %s81, 1
        %s229 = scalar_lea.sflag [#allocation7], %s228
        %s230 = sand.u32 %s81, 1
        %s231 = smul.addr %s230, 128
        %s232 = scalar_lea.vmem [#allocation6], %s231
        // Predicated region
        $region33: #{tpu_custom_call.1} parent=27 // pred_check
          %p233 = pneg %p94
        $region34: #{tpu_custom_call.1} parent=27 // pred_check_branch
          %235 = sbr.rel (%p233) target = $region36
        $region35: #{tpu_custom_call.1} parent=27 // pred_region
          %237 = dma.done %s229, 2048
        $region36: #{tpu_custom_call.1} parent=27 // pred_fallthru
          _
        %s238 = sand.u32 %s51, 1
        %s239 = scalar_lea.sflag [#allocation4], %s238
        %s240 = sand.u32 %s51, 1
        %s241 = smul.addr %s240, 4
        %s242 = scalar_lea.vmem [#allocation3], %s241
        %p243 = pneg %p64
        %p244 = pneg %p61
        %s245 = sand.u32 %s81, 1
        %s246 = scalar_lea.sflag [#allocation7], %s245
        %s247 = sand.u32 %s81, 1
        %s248 = smul.addr %s247, 128
        %s249 = scalar_lea.vmem [#allocation6], %s248
        %p250 = pneg %p94
        %p251 = pneg %p91
        %p252 = pneg %p120
        %p253 = pneg %p117
        %s254 = sand.u32 %s107, 1
        %s255 = scalar_lea.sflag [#allocation5], %s254
        %s256 = sand.u32 %s107, 1
        %s257 = smul.addr %s256, 2
        %s258 = scalar_lea.vmem [#allocation8], %s257
        %p259 = pneg %p146
        %p260 = pneg %p143
        %s261 = sand.u32 %s133, 1
        %s262 = scalar_lea.sflag [#allocation10], %s261
        %s263 = sand.u32 %s133, 1
        %s264 = scalar_lea.vmem [#allocation9], %s263
        %s265 = smul.u32 %s31, 2
        %s266 = sadd.s32 %s265, %s32
        %s267 = smul.u32 2, %s266
        %s268 = smul.u32 %s31, 2
        %s269 = sadd.s32 %s268, %s32
        %s270 = smul.u32 32, %s269
        %p271 = scmp.eq.s32.totalorder %s32, 0
        // Predicated region
        $region37: #{tpu_custom_call.1} parent=27 // pred_check
          %p272 = pneg %p271
        $region38: #{tpu_custom_call.1} parent=27 // pred_check_branch
          %274 = sbr.rel (%p272) target = $region40
        $region39: #{tpu_custom_call.1} parent=27 // pred_region
          %275 = vst [vmem:[%s258] sm:$0x3] 0.0
          %276 = vst [vmem:[#allocation2] sm:$0xf] 0.0
        $region40: #{tpu_custom_call.1} parent=27 // pred_fallthru
          _
        %v277 = vld [vmem:[%s222] sm:$0xf]
        %v278 = vld [vmem:[%s258] sm:$0x3]
        %280 = vst [vmem:[#allocation1] ss:$4 sm:$0xff] %v277
        %v281 = vld.sshfl [vmem:[#allocation1] sm:$0xff pattern:$0x73625140]
        %v282 = vld.sshfl [vmem:[#allocation1 + $0x8] sm:$0xff pattern:$0x73625140]
        %v285 = vpack.c.bf16 %v281, %v281
        %v286 = vpack.c.bf16 %v282, %v282
        %v287 = vld [vmem:[%s232] sm:$0xf]
        %v288 = vld [vmem:[%s232 + $0x4] sm:$0xf]
        %v289 = vld [vmem:[%s232 + $0x8] sm:$0xf]
        %v290 = vld [vmem:[%s232 + $0xc] sm:$0xf]
        %v291 = vld [vmem:[%s232 + $0x10] sm:$0xf]
        %v292 = vld [vmem:[%s232 + $0x14] sm:$0xf]
        %v293 = vld [vmem:[%s232 + $0x18] sm:$0xf]
        %v294 = vld [vmem:[%s232 + $0x1c] sm:$0xf]
        %v295 = vld [vmem:[%s232 + $0x20] sm:$0xf]
        %v296 = vld [vmem:[%s232 + $0x24] sm:$0xf]
        %v297 = vld [vmem:[%s232 + $0x28] sm:$0xf]
        %v298 = vld [vmem:[%s232 + $0x2c] sm:$0xf]
        %v299 = vld [vmem:[%s232 + $0x30] sm:$0xf]
        %v300 = vld [vmem:[%s232 + $0x34] sm:$0xf]
        %v301 = vld [vmem:[%s232 + $0x38] sm:$0xf]
        %v302 = vld [vmem:[%s232 + $0x3c] sm:$0xf]
        %v303 = vld [vmem:[%s232 + $0x40] sm:$0xf]
        %v304 = vld [vmem:[%s232 + $0x44] sm:$0xf]
        %v305 = vld [vmem:[%s232 + $0x48] sm:$0xf]
        %v306 = vld [vmem:[%s232 + $0x4c] sm:$0xf]
        %v307 = vld [vmem:[%s232 + $0x50] sm:$0xf]
        %v308 = vld [vmem:[%s232 + $0x54] sm:$0xf]
        %v309 = vld [vmem:[%s232 + $0x58] sm:$0xf]
        %v310 = vld [vmem:[%s232 + $0x5c] sm:$0xf]
        %v311 = vld [vmem:[%s232 + $0x60] sm:$0xf]
        %v312 = vld [vmem:[%s232 + $0x64] sm:$0xf]
        %v313 = vld [vmem:[%s232 + $0x68] sm:$0xf]
        %v314 = vld [vmem:[%s232 + $0x6c] sm:$0xf]
        %v315 = vld [vmem:[%s232 + $0x70] sm:$0xf]
        %v316 = vld [vmem:[%s232 + $0x74] sm:$0xf]
        %v317 = vld [vmem:[%s232 + $0x78] sm:$0xf]
        %v318 = vld [vmem:[%s232 + $0x7c] sm:$0xf]
        %v351 = vunpack.c.l.b16 %v287
        %v352 = vunpack.c.l.b16 %v288
        %v353 = vunpack.c.l.b16 %v289
        %v354 = vunpack.c.l.b16 %v290
        %v355 = vunpack.c.l.b16 %v291
        %v356 = vunpack.c.l.b16 %v292
        %v357 = vunpack.c.l.b16 %v293
        %v358 = vunpack.c.l.b16 %v294
        %v359 = vunpack.c.l.b16 %v295
        %v360 = vunpack.c.l.b16 %v296
        %v361 = vunpack.c.l.b16 %v297
        %v362 = vunpack.c.l.b16 %v298
        %v363 = vunpack.c.l.b16 %v299
        %v364 = vunpack.c.l.b16 %v300
        %v365 = vunpack.c.l.b16 %v301
        %v366 = vunpack.c.l.b16 %v302
        %v367 = vunpack.c.l.b16 %v303
        %v368 = vunpack.c.l.b16 %v304
        %v369 = vunpack.c.l.b16 %v305
        %v370 = vunpack.c.l.b16 %v306
        %v371 = vunpack.c.l.b16 %v307
        %v372 = vunpack.c.l.b16 %v308
        %v373 = vunpack.c.l.b16 %v309
        %v374 = vunpack.c.l.b16 %v310
        %v375 = vunpack.c.l.b16 %v311
        %v376 = vunpack.c.l.b16 %v312
        %v377 = vunpack.c.l.b16 %v313
        %v378 = vunpack.c.l.b16 %v314
        %v379 = vunpack.c.l.b16 %v315
        %v380 = vunpack.c.l.b16 %v316
        %v381 = vunpack.c.l.b16 %v317
        %v382 = vunpack.c.l.b16 %v318
        %v383 = vpack.c.b16 %v352, %v351
        %v384 = vpack.c.b16 %v354, %v353
        %v385 = vpack.c.b16 %v356, %v355
        %v386 = vpack.c.b16 %v358, %v357
        %v387 = vpack.c.b16 %v360, %v359
        %v388 = vpack.c.b16 %v362, %v361
        %v389 = vpack.c.b16 %v364, %v363
        %v390 = vpack.c.b16 %v366, %v365
        %v391 = vpack.c.b16 %v368, %v367
        %v392 = vpack.c.b16 %v370, %v369
        %v393 = vpack.c.b16 %v372, %v371
        %v394 = vpack.c.b16 %v374, %v373
        %v395 = vpack.c.b16 %v376, %v375
        %v396 = vpack.c.b16 %v378, %v377
        %v397 = vpack.c.b16 %v380, %v379
        %v398 = vpack.c.b16 %v382, %v381
        %415 = vmatpush.bf16.msra.mxu0 %v390
        %416 = vmatpush.bf16.msra.mxu0 %v389
        %417 = vmatpush.bf16.msra.mxu0 %v388
        %418 = vmatpush.bf16.msra.mxu0 %v387
        %419 = vmatpush.bf16.msra.mxu0 %v386
        %420 = vmatpush.bf16.msra.mxu0 %v385
        %421 = vmatpush.bf16.msra.mxu0 %v384
        %422 = vmatpush.bf16.msra.mxu0 %v383
        %423 = vmatmul.bf16.gmra.mxu0 %v285
        %v424 = vpop.f32.mrf.mxu0
        %v425 = vadd.f32 0.0, %v424
        %v426 = vpop.f32.mrf.mxu0
        %427 = vdwg.mxu0
        %428 = vmatpush.bf16.msra.mxu0 %v398
        %429 = vmatpush.bf16.msra.mxu0 %v397
        %430 = vmatpush.bf16.msra.mxu0 %v396
        %431 = vmatpush.bf16.msra.mxu0 %v395
        %432 = vmatpush.bf16.msra.mxu0 %v394
        %433 = vmatpush.bf16.msra.mxu0 %v393
        %434 = vmatpush.bf16.msra.mxu0 %v392
        %435 = vmatpush.bf16.msra.mxu0 %v391
        %436 = vmatmul.bf16.gmra.mxu0 %v286
        %v437 = vpop.f32.mrf.mxu0
        %v438 = vadd.f32 %v425, %v437
        %v439 = vpop.f32.mrf.mxu0
        %440 = vdwg.mxu0
        %v441 = vadd.f32 %v278, %v438
        %442 = vst [vmem:[%s258] sm:$0x3] %v441
        %v443 = vld [vmem:[#allocation2] sm:$0xf]
        %v444 = vmul.f32 %v277, %v277
        %v445 = vadd.f32 %v443, %v444
        %446 = vst [vmem:[#allocation2] sm:$0xf] %v445
        %p447 = scmp.eq.s32.totalorder %s32, 1
        // Predicated region
        $region41: #{tpu_custom_call.1} parent=27 // pred_check
          %p448 = pneg %p447
        $region42: #{tpu_custom_call.1} parent=27 // pred_check_branch
          %450 = sbr.rel (%p448) target = $region44
        $region43: #{tpu_custom_call.1} parent=27 // pred_region
          %v451 = vld [vmem:[#allocation2] sm:$0xf]
          %453 = vst [vmem:[#allocation1] ss:$4 sm:$0xff] %v451
          %v454 = vld.sshfl [vmem:[#allocation1] sm:$0xff pattern:$0x73625140]
          %v455 = vld.sshfl [vmem:[#allocation1 + $0x8] sm:$0xff pattern:$0x73625140]
          %vm458 = vcmask 1041408
          %v459 = vsel %vm458, %v454, 0.0
          %v460 = vsel %vm458, %v455, 0.0
          %v461 = vadd.f32 %v459, %v460
          %462 = vadd.xlane.f32.xlu0 %v461
          %v463 = vpop.xlane.xlu0 %462
          %v464 = vrot.slane %v463, 4
          %v465 = vadd.f32 %v463, %v464
          %v466 = vrot.slane %v465, 2
          %v467 = vadd.f32 %v465, %v466
          %v468 = vrot.slane %v467, 1
          %v469 = vadd.f32 %v467, %v468
          %s470 = vtos %v469
          %v471 = vstv %s470
          %472 = vst [vmem:[%s264] sm:$0x1] %v471
        $region44: #{tpu_custom_call.1} parent=27 // pred_fallthru
          _
        %s473 = sand.u32 %s107, 1
        %s474 = scalar_lea.sflag [#allocation5], %s473
        %s475 = sand.u32 %s107, 1
        %s476 = smul.addr %s475, 2
        %s477 = scalar_lea.vmem [#allocation8], %s476
        %s478 = sand.u32 %s133, 1
        %s479 = scalar_lea.sflag [#allocation10], %s478
        %s480 = sand.u32 %s133, 1
        %s481 = scalar_lea.vmem [#allocation9], %s480
        // Predicated region
        $region45: #{tpu_custom_call.1} parent=27 // pred_check
          %p482 = pneg %p117
        $region46: #{tpu_custom_call.1} parent=27 // pred_check_branch
          %484 = sbr.rel (%p482) target = $region48
        $region47: #{tpu_custom_call.1} parent=27 // pred_region
          %486 = vsyncadd %s474, 0
          %s487 = smul.addr %s31, 2
          %s488 = scalar_lea.hbm %s2, %s487
          %s490 = sshll.u32 %s477, 4
          %s491 = int_to_ptr.vmem [resolvable:$true] %s490
          %s492 = sshll.u32 %s488, 4
          %s493 = int_to_ptr.hbm [resolvable:$true] %s492
          %495 = dma.vmem_to_hbm [thread:$0]  %s491, 32, %s493, %s474
        $region48: #{tpu_custom_call.1} parent=27 // pred_fallthru
          _
        // Predicated region
        $region49: #{tpu_custom_call.1} parent=27 // pred_check
          %p496 = pneg %p143
        $region50: #{tpu_custom_call.1} parent=27 // pred_check_branch
          %498 = sbr.rel (%p496) target = $region52
        $region51: #{tpu_custom_call.1} parent=27 // pred_region
          %500 = vsyncadd %s479, 0
          %s501 = scalar_lea.hbm %s3, %s31
          %s503 = sshll.u32 %s481, 4
          %s504 = int_to_ptr.vmem [resolvable:$true] %s503
          %s505 = sshll.u32 %s501, 4
          %s506 = int_to_ptr.hbm [resolvable:$true] %s505
          %508 = dma.vmem_to_hbm [thread:$0]  %s504, 16, %s506, %s479
        $region52: #{tpu_custom_call.1} parent=27 // pred_fallthru
          _
      $region28: #{tpu_custom_call.1} parent=5 // pred_fallthru
        _
      %p509 = scmp.le.s32.totalorder 2, %s22
      // Predicated region
      $region53: #{tpu_custom_call.1} parent=5 // pred_check
        %p510 = pneg %p509
      $region54: #{tpu_custom_call.1} parent=5 // pred_check_branch
        %512 = sbr.rel (%p510) target = $region56
      $region55: #{tpu_custom_call.1} parent=5 // pred_region
        %s513 = ssub.s32 %s22, 2
        // Predicated region
        $region57: #{tpu_custom_call.1} parent=55 // pred_check
          %p514 = pneg %p123
        $region58: #{tpu_custom_call.1} parent=55 // pred_check_branch
          %516 = sbr.rel (%p514) target = $region60
        $region59: #{tpu_custom_call.1} parent=55 // pred_region
          %s517 = sand.u32 %s108, 1
          %s518 = scalar_lea.sflag [#allocation5], %s517
          %s519 = sand.u32 %s108, 1
          %s520 = smul.addr %s519, 2
          %s521 = scalar_lea.vmem [#allocation8], %s520
          %523 = dma.done %s518, 32
        $region60: #{tpu_custom_call.1} parent=55 // pred_fallthru
          _
        // Predicated region
        $region61: #{tpu_custom_call.1} parent=55 // pred_check
          %p524 = pneg %p149
        $region62: #{tpu_custom_call.1} parent=55 // pred_check_branch
          %526 = sbr.rel (%p524) target = $region64
        $region63: #{tpu_custom_call.1} parent=55 // pred_region
          %s527 = sand.u32 %s134, 1
          %s528 = scalar_lea.sflag [#allocation10], %s527
          %s529 = sand.u32 %s134, 1
          %s530 = scalar_lea.vmem [#allocation9], %s529
          %532 = dma.done %s528, 16
        $region64: #{tpu_custom_call.1} parent=55 // pred_fallthru
          _
      $region56: #{tpu_custom_call.1} parent=5 // pred_fallthru
        _
    $region6: #{tpu_custom_call.1} parent=1 // loop_footer
      %s26 = sadd.s32 1, %s22
    $region7: #{tpu_custom_call.1} parent=1 // loop_footer_branch
      %21 = sbr.rel target = $region3
    $region8: #{tpu_custom_call.1} parent=1 // loop_exit
      _
    %533 = vsyncpa [#allocation4], 1
    %s534 = scalar_lea.sflag [#allocation4], 1
    %535 = vsyncpa %s534, 1
    %536 = vsyncpa [#allocation7], 1
    %s537 = scalar_lea.sflag [#allocation7], 1
    %538 = vsyncpa %s537, 1
    %539 = vsyncpa [#allocation5], 1
    %s540 = scalar_lea.sflag [#allocation5], 1
    %541 = vsyncpa %s540, 1
    %542 = vsyncpa [#allocation10], 1
    %s543 = scalar_lea.sflag [#allocation10], 1
    %544 = vsyncpa %s543, 1

</llo_original>
